<compile_context>
chip_gen: v7x
topology: tpu7x:2x2x1
jax: 0.10.0
libtpu: 0.0.40
codegen_flags: <defaults>
</compile_context>

<pallas_src>
import functools

import jax
import jax.numpy as jnp
from jax.experimental import pallas as pl
from jax.experimental.pallas import tpu as pltpu

D_IN = 256      # input features (fixed by Mynn)
H_PAD = 128     # hidden width 64 padded to lane width 128
OUT_PAD = 128   # output width 10 padded to 128 (lane-dense stores)
N_OUT = 10      # real number of classes
TB = 128        # batch tile: multiple of 8 (f32 sublane), fills MXU M-dim
NEG = -1e30     # bias for padded output columns -> excluded from log-softmax


def mynn_kernel(x_ref, w1_ref, b1_ref, w2_ref, b2_ref, w3_ref, b3_ref, o_ref):
    cdt = w1_ref.dtype  # compute dtype fed to the MXU (bf16 here)

    # hidden1 + ReLU (clamp(min=0)); bias add / ReLU in f32
    h1 = jnp.dot(x_ref[...], w1_ref[...], preferred_element_type=jnp.float32)
    h1 = jnp.maximum(h1 + b1_ref[...], 0.0)

    # hidden2 + ReLU
    h2 = jnp.dot(h1.astype(cdt), w2_ref[...], preferred_element_type=jnp.float32)
    h2 = jnp.maximum(h2 + b2_ref[...], 0.0)

    # output layer; padded columns carry bias -1e30 so softmax ignores them
    logits = jnp.dot(h2.astype(cdt), w3_ref[...], preferred_element_type=jnp.float32)
    logits = logits + b3_ref[...]

    # numerically stable LogSoftmax over the (padded, lane-dense) last axis
    m = jnp.max(logits, axis=-1, keepdims=True)
    shifted = logits - m
    lse = jnp.log(jnp.sum(jnp.exp(shifted), axis=-1, keepdims=True))
    o_ref[...] = (shifted - lse).astype(o_ref.dtype)


def _pad2(a, rows, cols, value=0.0):
    r, c = a.shape
    return jnp.pad(a, ((0, rows - r), (0, cols - c)), constant_values=value)


@functools.partial(jax.jit, static_argnames=("compute_dtype",))
def mynn_forward(x, w1, b1, w2, b2, w3, b3, *, compute_dtype=jnp.bfloat16):
    B = x.shape[0]

    # --- pad parameters to lane-dense shapes (zeros preserve the math; ReLU
    #     keeps padded hidden activations at exactly 0) ------------------------
    w1p = _pad2(w1, D_IN, H_PAD).astype(compute_dtype)        # [256, 128]
    w2p = _pad2(w2, H_PAD, H_PAD).astype(compute_dtype)       # [128, 128]
    w3p = _pad2(w3, H_PAD, OUT_PAD).astype(compute_dtype)     # [128, 128]
    b1p = _pad2(b1.reshape(1, -1).astype(jnp.float32), 1, H_PAD)
    b2p = _pad2(b2.reshape(1, -1).astype(jnp.float32), 1, H_PAD)
    b3p = _pad2(b3.reshape(1, -1).astype(jnp.float32), 1, OUT_PAD, value=NEG)

    # --- pad batch to a multiple of the batch tile ----------------------------
    Bp = pl.cdiv(B, TB) * TB
    xp = jnp.pad(x, ((0, Bp - B), (0, 0))).astype(compute_dtype)

    weight_bytes = sum(a.size * a.dtype.itemsize
                       for a in (w1p, w2p, w3p, b1p, b2p, b3p))
    cost = pl.CostEstimate(
        flops=2 * Bp * (D_IN * H_PAD + H_PAD * H_PAD + H_PAD * OUT_PAD),
        transcendentals=Bp * (OUT_PAD + 1),                 # exp + log
        bytes_accessed=xp.size * xp.dtype.itemsize + weight_bytes
                       + Bp * OUT_PAD * 4,
    )

    out = pl.pallas_call(
        mynn_kernel,
        out_shape=jax.ShapeDtypeStruct((Bp, OUT_PAD), jnp.float32),
        grid_spec=pltpu.PrefetchScalarGridSpec(
            num_scalar_prefetch=0,
            grid=(Bp // TB,),
            in_specs=[
                pl.BlockSpec((TB, D_IN), lambda i: (i, 0)),        # x tile
                pl.BlockSpec((D_IN, H_PAD), lambda i: (0, 0)),     # w1
                pl.BlockSpec((1, H_PAD), lambda i: (0, 0)),        # b1
                pl.BlockSpec((H_PAD, H_PAD), lambda i: (0, 0)),    # w2
                pl.BlockSpec((1, H_PAD), lambda i: (0, 0)),        # b2
                pl.BlockSpec((H_PAD, OUT_PAD), lambda i: (0, 0)),  # w3
                pl.BlockSpec((1, OUT_PAD), lambda i: (0, 0)),      # b3
            ],
            out_specs=pl.BlockSpec((TB, OUT_PAD), lambda i: (i, 0)),
        ),
        compiler_params=pltpu.CompilerParams(
            dimension_semantics=("parallel",),   # shard batch tiles across TCs (v7x)
        ),
        cost_estimate=cost,
    )(xp, w1p, b1p, w2p, b2p, w3p, b3p)

    # slice away batch padding and the padded output columns
    return out[:B, :N_OUT]


def _init_linear(key, fan_in, fan_out):
    # Mirror torch.nn.Linear default init: U(-1/sqrt(fan_in), 1/sqrt(fan_in)).
    kw, kb = jax.random.split(key)
    bound = 1.0 / jnp.sqrt(jnp.float32(fan_in))
    # Stored as [in, out] (transpose of PyTorch's [out, in]) so kernel does x @ W.
    w = jax.random.uniform(kw, (fan_in, fan_out), jnp.float32, -bound, bound)
    b = jax.random.uniform(kb, (fan_out,), jnp.float32, -bound, bound)
    return w, b


def _reference(x, w1, b1, w2, b2, w3, b3, compute_dtype=jnp.bfloat16):
    # Mirrors the kernel's mixed precision (bf16 into the MXU, f32 elsewhere).
    cdt = compute_dtype
    h1 = jnp.dot(x.astype(cdt), w1.astype(cdt),
                 preferred_element_type=jnp.float32) + b1
    h1 = jnp.maximum(h1, 0.0)
    h2 = jnp.dot(h1.astype(cdt), w2.astype(cdt),
                 preferred_element_type=jnp.float32) + b2
    h2 = jnp.maximum(h2, 0.0)
    logits = jnp.dot(h2.astype(cdt), w3.astype(cdt),
                     preferred_element_type=jnp.float32) + b3
    return jax.nn.log_softmax(logits, axis=1)


if __name__ == "__main__":
    key = jax.random.PRNGKey(0)
    kx, k1, k2, k3 = jax.random.split(key, 4)

    B = 300                      # exercises batch tiling (3 tiles) + batch padding
    dims = [256, 64, 64, 10]     # neuros_per_layer from Mynn.__init__

    x = jax.random.normal(kx, (B, dims[0]), jnp.float32)
    w1, b1 = _init_linear(k1, dims[0], dims[1])
    w2, b2 = _init_linear(k2, dims[1], dims[2])
    w3, b3 = _init_linear(k3, dims[2], dims[3])

    y = mynn_forward(x, w1, b1, w2, b2, w3, b3, compute_dtype=jnp.bfloat16)
    y = jax.block_until_ready(y)

    y_ref = _reference(x, w1, b1, w2, b2, w3, b3, compute_dtype=jnp.bfloat16)
    assert y.shape == (B, dims[3])
    # bf16 MXU inputs -> compare against a bf16-consistent reference with a
    # correspondingly relaxed tolerance.
    assert bool(jnp.allclose(y, y_ref, atol=1e-3, rtol=1e-3)), "mismatch vs reference"

    print("KERNEL_OK")
</pallas_src>

<mosaic_0001>
module attributes {stable_mosaic.version = 11 : i64} {
  func.func @mynn_kernel(%arg0: i32, %arg1: memref<128x256xbf16, #tpu.memory_space<vmem>>, %arg2: memref<256x128xbf16, #tpu.memory_space<vmem>>, %arg3: memref<1x128xf32, #tpu.memory_space<vmem>>, %arg4: memref<128x128xbf16, #tpu.memory_space<vmem>>, %arg5: memref<1x128xf32, #tpu.memory_space<vmem>>, %arg6: memref<128x128xbf16, #tpu.memory_space<vmem>>, %arg7: memref<1x128xf32, #tpu.memory_space<vmem>>, %arg8: memref<128x128xf32, #tpu.memory_space<vmem>>) attributes {dimension_semantics = [#tpu.dimension_semantics<parallel>], iteration_bounds = array<i64: 3>, scalar_prefetch = 0 : i64, scratch_operands = 0 : i64, tpu.core_type = #tpu.core_type<tc>, window_params = [{transform_indices = @transform_0, window_bounds = array<i64: 128, 256>}, {pipeline_mode = #tpu.pipeline_mode<synchronous>, transform_indices = @transform_1, window_bounds = array<i64: 256, 128>}, {pipeline_mode = #tpu.pipeline_mode<synchronous>, transform_indices = @transform_2, window_bounds = array<i64: 1, 128>}, {pipeline_mode = #tpu.pipeline_mode<synchronous>, transform_indices = @transform_3, window_bounds = array<i64: 128, 128>}, {pipeline_mode = #tpu.pipeline_mode<synchronous>, transform_indices = @transform_4, window_bounds = array<i64: 1, 128>}, {pipeline_mode = #tpu.pipeline_mode<synchronous>, transform_indices = @transform_5, window_bounds = array<i64: 128, 128>}, {pipeline_mode = #tpu.pipeline_mode<synchronous>, transform_indices = @transform_6, window_bounds = array<i64: 1, 128>}, {transform_indices = @transform_7, window_bounds = array<i64: 128, 128>}]} {
    %c0 = arith.constant 0 : index
    %c0_0 = arith.constant 0 : index
    %0 = vector.load %arg1[%c0, %c0_0] : memref<128x256xbf16, #tpu.memory_space<vmem>>, vector<128x256xbf16>
    %c0_1 = arith.constant 0 : index
    %c0_2 = arith.constant 0 : index
    %1 = vector.load %arg2[%c0_1, %c0_2] : memref<256x128xbf16, #tpu.memory_space<vmem>>, vector<256x128xbf16>
    %cst = arith.constant dense<0.000000e+00> : vector<128x128xf32>
    %2 = tpu.matmul %0, %1, %cst {dimension_numbers = #tpu.dot_dimension_numbers<[1], [0], [0], [1], [0, 0, 1, 1], [], []>} : vector<128x256xbf16>, vector<256x128xbf16>, vector<128x128xf32> -> vector<128x128xf32>
    %c0_3 = arith.constant 0 : index
    %c0_4 = arith.constant 0 : index
    %3 = vector.load %arg3[%c0_3, %c0_4] : memref<1x128xf32, #tpu.memory_space<vmem>>, vector<1x128xf32>
    %4 = vector.broadcast %3 : vector<1x128xf32> to vector<128x128xf32>
    %5 = arith.addf %2, %4 : vector<128x128xf32>
    %cst_5 = arith.constant 0.000000e+00 : f32
    %6 = vector.broadcast %cst_5 : f32 to vector<128x128xf32>
    %7 = arith.maximumf %5, %6 : vector<128x128xf32>
    %8 = arith.truncf %7 : vector<128x128xf32> to vector<128x128xbf16>
    %c0_6 = arith.constant 0 : index
    %c0_7 = arith.constant 0 : index
    %9 = vector.load %arg4[%c0_6, %c0_7] : memref<128x128xbf16, #tpu.memory_space<vmem>>, vector<128x128xbf16>
    %cst_8 = arith.constant dense<0.000000e+00> : vector<128x128xf32>
    %10 = tpu.matmul %8, %9, %cst_8 {dimension_numbers = #tpu.dot_dimension_numbers<[1], [0], [0], [1], [0, 0, 1, 1], [], []>} : vector<128x128xbf16>, vector<128x128xbf16>, vector<128x128xf32> -> vector<128x128xf32>
    %c0_9 = arith.constant 0 : index
    %c0_10 = arith.constant 0 : index
    %11 = vector.load %arg5[%c0_9, %c0_10] : memref<1x128xf32, #tpu.memory_space<vmem>>, vector<1x128xf32>
    %12 = vector.broadcast %11 : vector<1x128xf32> to vector<128x128xf32>
    %13 = arith.addf %10, %12 : vector<128x128xf32>
    %cst_11 = arith.constant 0.000000e+00 : f32
    %14 = vector.broadcast %cst_11 : f32 to vector<128x128xf32>
    %15 = arith.maximumf %13, %14 : vector<128x128xf32>
    %16 = arith.truncf %15 : vector<128x128xf32> to vector<128x128xbf16>
    %c0_12 = arith.constant 0 : index
    %c0_13 = arith.constant 0 : index
    %17 = vector.load %arg6[%c0_12, %c0_13] : memref<128x128xbf16, #tpu.memory_space<vmem>>, vector<128x128xbf16>
    %cst_14 = arith.constant dense<0.000000e+00> : vector<128x128xf32>
    %18 = tpu.matmul %16, %17, %cst_14 {dimension_numbers = #tpu.dot_dimension_numbers<[1], [0], [0], [1], [0, 0, 1, 1], [], []>} : vector<128x128xbf16>, vector<128x128xbf16>, vector<128x128xf32> -> vector<128x128xf32>
    %c0_15 = arith.constant 0 : index
    %c0_16 = arith.constant 0 : index
    %19 = vector.load %arg7[%c0_15, %c0_16] : memref<1x128xf32, #tpu.memory_space<vmem>>, vector<1x128xf32>
    %20 = vector.broadcast %19 : vector<1x128xf32> to vector<128x128xf32>
    %21 = arith.addf %18, %20 : vector<128x128xf32>
    %cst_17 = arith.constant dense<0xFF800000> : vector<128xf32>
    %22 = vector.multi_reduction <maximumf>, %21, %cst_17 [1] : vector<128x128xf32> to vector<128xf32>
    %23 = vector.shape_cast %22 : vector<128xf32> to vector<128x1xf32>
    %24 = vector.broadcast %23 : vector<128x1xf32> to vector<128x128xf32>
    %25 = arith.subf %21, %24 : vector<128x128xf32>
    %26 = math.exp %25 : vector<128x128xf32>
    %cst_18 = arith.constant dense<0.000000e+00> : vector<128xf32>
    %27 = vector.multi_reduction <add>, %26, %cst_18 [1] : vector<128x128xf32> to vector<128xf32>
    %28 = vector.shape_cast %27 : vector<128xf32> to vector<128x1xf32>
    %29 = math.log %28 : vector<128x1xf32>
    %30 = vector.broadcast %29 : vector<128x1xf32> to vector<128x128xf32>
    %31 = arith.subf %25, %30 : vector<128x128xf32>
    %c0_19 = arith.constant 0 : index
    %c0_20 = arith.constant 0 : index
    %32 = vector.load %arg8[%c0_19, %c0_20] : memref<128x128xf32, #tpu.memory_space<vmem>>, vector<128x128xf32>
    tpu.vector_store %arg8[%c0_19, %c0_20], %31 {strides = array<i32>} : memref<128x128xf32, #tpu.memory_space<vmem>>, vector<128x128xf32>,
    return
  }
  func.func @transform_0(%arg0: i32) -> (i32, i32) {
    %c0_i32 = arith.constant 0 : i32
    %c0_i32_0 = arith.constant 0 : i32
    return %arg0, %c0_i32 : i32, i32
  }
  func.func @transform_1(%arg0: i32) -> (i32, i32) {
    %c0_i32 = arith.constant 0 : i32
    %c0_i32_0 = arith.constant 0 : i32
    %c0_i32_1 = arith.constant 0 : i32
    return %c0_i32, %c0_i32_0 : i32, i32
  }
  func.func @transform_2(%arg0: i32) -> (i32, i32) {
    %c0_i32 = arith.constant 0 : i32
    %c0_i32_0 = arith.constant 0 : i32
    %c0_i32_1 = arith.constant 0 : i32
    return %c0_i32, %c0_i32_0 : i32, i32
  }
  func.func @transform_3(%arg0: i32) -> (i32, i32) {
    %c0_i32 = arith.constant 0 : i32
    %c0_i32_0 = arith.constant 0 : i32
    %c0_i32_1 = arith.constant 0 : i32
    return %c0_i32, %c0_i32_0 : i32, i32
  }
  func.func @transform_4(%arg0: i32) -> (i32, i32) {
    %c0_i32 = arith.constant 0 : i32
    %c0_i32_0 = arith.constant 0 : i32
    %c0_i32_1 = arith.constant 0 : i32
    return %c0_i32, %c0_i32_0 : i32, i32
  }
  func.func @transform_5(%arg0: i32) -> (i32, i32) {
    %c0_i32 = arith.constant 0 : i32
    %c0_i32_0 = arith.constant 0 : i32
    %c0_i32_1 = arith.constant 0 : i32
    return %c0_i32, %c0_i32_0 : i32, i32
  }
  func.func @transform_6(%arg0: i32) -> (i32, i32) {
    %c0_i32 = arith.constant 0 : i32
    %c0_i32_0 = arith.constant 0 : i32
    %c0_i32_1 = arith.constant 0 : i32
    return %c0_i32, %c0_i32_0 : i32, i32
  }
  func.func @transform_7(%arg0: i32) -> (i32, i32) {
    %c0_i32 = arith.constant 0 : i32
    %c0_i32_0 = arith.constant 0 : i32
    return %arg0, %c0_i32 : i32, i32
  }
}

</mosaic_0001>

<llo_original>
// kernel: mynn_forward.1
$region0: #{mynn_forward.1}
  #allocation0 [shape = 'u32[]', space=smem, size = 0x4, offset = 0x4, fixed_abs, tag = 'smem constant byte address 0x4 - core index']
  #allocation1 [shape = 'u32[144,128]{1,0:T(1,128)}', space=vmem, size = 0x12000, scoped, tag = 'internal scratch']
  %s0 = inlined_call_operand.vmem [shape: bf16[384,256], index: 0, kind: input, shape index: {}]
  %s1 = inlined_call_operand.vmem [shape: bf16[256,128], index: 1, kind: input, shape index: {}]
  %s2 = inlined_call_operand.vmem [shape: f32[1,128], index: 2, kind: input, shape index: {}]
  %s3 = inlined_call_operand.vmem [shape: bf16[128,128], index: 3, kind: input, shape index: {}]
  %s4 = inlined_call_operand.vmem [shape: f32[1,128], index: 4, kind: input, shape index: {}]
  %s5 = inlined_call_operand.vmem [shape: bf16[128,128], index: 5, kind: input, shape index: {}]
  %s6 = inlined_call_operand.vmem [shape: f32[1,128], index: 6, kind: input, shape index: {}]
  %s7 = inlined_call_operand.vmem [shape: f32[384,128], index: 7, kind: output, shape index: {}]
  %s8 = sld [smem:[#allocation0]]
  $region61: #{mynn_forward.1} parent=0
    _
  %s10 = ssub.s32 1, %s8
  %s11 = scalar_select 0, %s10, %s8
  loop: start=0, step=1, limit=5
  $region2: #{mynn_forward.1} parent=0 // loop_pre_header
    _
  $region3: #{mynn_forward.1} parent=0 // loop_header
    %s13 = sphi 0, %s17
    %p14 = scmp.ge.s32.totalorder %s13, 5
    %s23 = sphi 0, %s25
    %s26 = sphi 0, %s23
    %s27 = sphi 0, %s26
    %s43 = sphi 0, %s27
    %s47 = sphi 0, %s47
    %s49 = sphi 0, %s47
    %s50 = sphi 0, %s49
    %s64 = sphi 0, %s50
    %s68 = sphi 0, %s68
    %s70 = sphi 0, %s68
    %s71 = sphi 0, %s70
    %s85 = sphi 0, %s71
    %s89 = sphi 0, %s89
    %s91 = sphi 0, %s89
    %s92 = sphi 0, %s91
    %s106 = sphi 0, %s92
    %s110 = sphi 0, %s110
    %s112 = sphi 0, %s110
    %s113 = sphi 0, %s112
    %s127 = sphi 0, %s113
    %s131 = sphi 0, %s131
    %s133 = sphi 0, %s131
    %s134 = sphi 0, %s133
    %s148 = sphi 0, %s134
    %s152 = sphi 0, %s152
    %s154 = sphi 0, %s152
    %s155 = sphi 0, %s154
    %s169 = sphi 0, %s155
    %s175 = sphi 0, %s177
    %s178 = sphi 0, %s175
    %s179 = sphi 0, %s178
    %s195 = sphi 0, %s179
  $region4: #{mynn_forward.1} parent=0 // loop_header_branch
    %16 = sbr.rel (%p14) target = $region8
  $region5: #{mynn_forward.1} parent=0 // loop_body
    %s18 = ssub.s32 %s13, 1
    %s19 = ssub.s32 %s13, 2
    %s20 = sadd.s32 %s13, 1
    %s21 = ssub.s32 %s13, %s20
    %p22 = scmp.eq.s32.totalorder %s21, 0
    %s24 = sadd.s32 %s23, 1
    %s25 = scalar_select %p22, %s23, %s24
    %p28 = pneg %p22
    %p29 = scmp.eq.s32.totalorder %s13, 2
    %p30 = por %p28, %p29
    %p31 = scmp.ne.s32.totalorder %s23, %s26
    %p32 = scmp.eq.s32.totalorder %s13, 0
    %p33 = por %p31, %p32
    %p34 = scmp.ne.s32.totalorder %s23, %s26
    %p35 = scmp.eq.s32.totalorder %s18, 2
    %p36 = por %p34, %p35
    %p37 = scmp.ne.s32.totalorder %s26, %s27
    %p38 = scmp.eq.s32.totalorder %s18, 0
    %p39 = por %p37, %p38
    %p40 = scmp.ne.s32.totalorder %s26, %s27
    %p41 = scmp.eq.s32.totalorder %s19, 2
    %p42 = por %p40, %p41
    %p44 = scmp.ne.s32.totalorder %s27, %s43
    %p45 = scmp.eq.s32.totalorder %s19, 0
    %p46 = por %p44, %p45
    %s48 = sadd.s32 %s47, 1
    %p51 = scmp.eq.s32.totalorder %s13, 2
    %p52 = scmp.ne.s32.totalorder %s47, %s49
    %p53 = scmp.eq.s32.totalorder %s13, 0
    %p54 = por %p52, %p53
    %p55 = scmp.ne.s32.totalorder %s47, %s49
    %p56 = scmp.eq.s32.totalorder %s18, 2
    %p57 = por %p55, %p56
    %p58 = scmp.ne.s32.totalorder %s49, %s50
    %p59 = scmp.eq.s32.totalorder %s18, 0
    %p60 = por %p58, %p59
    %p61 = scmp.ne.s32.totalorder %s49, %s50
    %p62 = scmp.eq.s32.totalorder %s19, 2
    %p63 = por %p61, %p62
    %p65 = scmp.ne.s32.totalorder %s50, %s64
    %p66 = scmp.eq.s32.totalorder %s19, 0
    %p67 = por %p65, %p66
    %s69 = sadd.s32 %s68, 1
    %p72 = scmp.eq.s32.totalorder %s13, 2
    %p73 = scmp.ne.s32.totalorder %s68, %s70
    %p74 = scmp.eq.s32.totalorder %s13, 0
    %p75 = por %p73, %p74
    %p76 = scmp.ne.s32.totalorder %s68, %s70
    %p77 = scmp.eq.s32.totalorder %s18, 2
    %p78 = por %p76, %p77
    %p79 = scmp.ne.s32.totalorder %s70, %s71
    %p80 = scmp.eq.s32.totalorder %s18, 0
    %p81 = por %p79, %p80
    %p82 = scmp.ne.s32.totalorder %s70, %s71
    %p83 = scmp.eq.s32.totalorder %s19, 2
    %p84 = por %p82, %p83
    %p86 = scmp.ne.s32.totalorder %s71, %s85
    %p87 = scmp.eq.s32.totalorder %s19, 0
    %p88 = por %p86, %p87
    %s90 = sadd.s32 %s89, 1
    %p93 = scmp.eq.s32.totalorder %s13, 2
    %p94 = scmp.ne.s32.totalorder %s89, %s91
    %p95 = scmp.eq.s32.totalorder %s13, 0
    %p96 = por %p94, %p95
    %p97 = scmp.ne.s32.totalorder %s89, %s91
    %p98 = scmp.eq.s32.totalorder %s18, 2
    %p99 = por %p97, %p98
    %p100 = scmp.ne.s32.totalorder %s91, %s92
    %p101 = scmp.eq.s32.totalorder %s18, 0
    %p102 = por %p100, %p101
    %p103 = scmp.ne.s32.totalorder %s91, %s92
    %p104 = scmp.eq.s32.totalorder %s19, 2
    %p105 = por %p103, %p104
    %p107 = scmp.ne.s32.totalorder %s92, %s106
    %p108 = scmp.eq.s32.totalorder %s19, 0
    %p109 = por %p107, %p108
    %s111 = sadd.s32 %s110, 1
    %p114 = scmp.eq.s32.totalorder %s13, 2
    %p115 = scmp.ne.s32.totalorder %s110, %s112
    %p116 = scmp.eq.s32.totalorder %s13, 0
    %p117 = por %p115, %p116
    %p118 = scmp.ne.s32.totalorder %s110, %s112
    %p119 = scmp.eq.s32.totalorder %s18, 2
    %p120 = por %p118, %p119
    %p121 = scmp.ne.s32.totalorder %s112, %s113
    %p122 = scmp.eq.s32.totalorder %s18, 0
    %p123 = por %p121, %p122
    %p124 = scmp.ne.s32.totalorder %s112, %s113
    %p125 = scmp.eq.s32.totalorder %s19, 2
    %p126 = por %p124, %p125
    %p128 = scmp.ne.s32.totalorder %s113, %s127
    %p129 = scmp.eq.s32.totalorder %s19, 0
    %p130 = por %p128, %p129
    %s132 = sadd.s32 %s131, 1
    %p135 = scmp.eq.s32.totalorder %s13, 2
    %p136 = scmp.ne.s32.totalorder %s131, %s133
    %p137 = scmp.eq.s32.totalorder %s13, 0
    %p138 = por %p136, %p137
    %p139 = scmp.ne.s32.totalorder %s131, %s133
    %p140 = scmp.eq.s32.totalorder %s18, 2
    %p141 = por %p139, %p140
    %p142 = scmp.ne.s32.totalorder %s133, %s134
    %p143 = scmp.eq.s32.totalorder %s18, 0
    %p144 = por %p142, %p143
    %p145 = scmp.ne.s32.totalorder %s133, %s134
    %p146 = scmp.eq.s32.totalorder %s19, 2
    %p147 = por %p145, %p146
    %p149 = scmp.ne.s32.totalorder %s134, %s148
    %p150 = scmp.eq.s32.totalorder %s19, 0
    %p151 = por %p149, %p150
    %s153 = sadd.s32 %s152, 1
    %p156 = scmp.eq.s32.totalorder %s13, 2
    %p157 = scmp.ne.s32.totalorder %s152, %s154
    %p158 = scmp.eq.s32.totalorder %s13, 0
    %p159 = por %p157, %p158
    %p160 = scmp.ne.s32.totalorder %s152, %s154
    %p161 = scmp.eq.s32.totalorder %s18, 2
    %p162 = por %p160, %p161
    %p163 = scmp.ne.s32.totalorder %s154, %s155
    %p164 = scmp.eq.s32.totalorder %s18, 0
    %p165 = por %p163, %p164
    %p166 = scmp.ne.s32.totalorder %s154, %s155
    %p167 = scmp.eq.s32.totalorder %s19, 2
    %p168 = por %p166, %p167
    %p170 = scmp.ne.s32.totalorder %s155, %s169
    %p171 = scmp.eq.s32.totalorder %s19, 0
    %p172 = por %p170, %p171
    %s173 = ssub.s32 %s13, %s20
    %p174 = scmp.eq.s32.totalorder %s173, 0
    %s176 = sadd.s32 %s175, 1
    %s177 = scalar_select %p174, %s175, %s176
    %p180 = pneg %p174
    %p181 = scmp.eq.s32.totalorder %s13, 2
    %p182 = por %p180, %p181
    %p183 = scmp.ne.s32.totalorder %s175, %s178
    %p184 = scmp.eq.s32.totalorder %s13, 0
    %p185 = por %p183, %p184
    %p186 = scmp.ne.s32.totalorder %s175, %s178
    %p187 = scmp.eq.s32.totalorder %s18, 2
    %p188 = por %p186, %p187
    %p189 = scmp.ne.s32.totalorder %s178, %s179
    %p190 = scmp.eq.s32.totalorder %s18, 0
    %p191 = por %p189, %p190
    %p192 = scmp.ne.s32.totalorder %s178, %s179
    %p193 = scmp.eq.s32.totalorder %s19, 2
    %p194 = por %p192, %p193
    %p196 = scmp.ne.s32.totalorder %s179, %s195
    %p197 = scmp.eq.s32.totalorder %s19, 0
    %p198 = por %p196, %p197
    %p199 = scmp.le.s32.totalorder 1, %s13
    %p200 = scmp.lt.s32.totalorder %s13, 4
    %p201 = pnand %p199, %p200
    %p202 = pneg %p201
    // Predicated region
    $region9: #{mynn_forward.1} parent=5 // pred_check
      _
    $region10: #{mynn_forward.1} parent=5 // pred_check_branch
      %204 = sbr.rel (%p201) target = $region12
    $region11: #{mynn_forward.1} parent=5 // pred_region
      %s205 = ssub.s32 %s13, 1
      // Predicated region
      $region13: #{mynn_forward.1} parent=11 // pred_check
        %p206 = pneg %p60
      $region14: #{mynn_forward.1} parent=11 // pred_check_branch
        %208 = sbr.rel (%p206) target = $region16
      $region15: #{mynn_forward.1} parent=11 // pred_region
        _
      $region16: #{mynn_forward.1} parent=11 // pred_fallthru
        _
      // Predicated region
      $region17: #{mynn_forward.1} parent=11 // pred_check
        %p209 = pneg %p81
      $region18: #{mynn_forward.1} parent=11 // pred_check_branch
        %211 = sbr.rel (%p209) target = $region20
      $region19: #{mynn_forward.1} parent=11 // pred_region
        _
      $region20: #{mynn_forward.1} parent=11 // pred_fallthru
        _
      // Predicated region
      $region21: #{mynn_forward.1} parent=11 // pred_check
        %p212 = pneg %p102
      $region22: #{mynn_forward.1} parent=11 // pred_check_branch
        %214 = sbr.rel (%p212) target = $region24
      $region23: #{mynn_forward.1} parent=11 // pred_region
        _
      $region24: #{mynn_forward.1} parent=11 // pred_fallthru
        _
      // Predicated region
      $region25: #{mynn_forward.1} parent=11 // pred_check
        %p215 = pneg %p123
      $region26: #{mynn_forward.1} parent=11 // pred_check_branch
        %217 = sbr.rel (%p215) target = $region28
      $region27: #{mynn_forward.1} parent=11 // pred_region
        _
      $region28: #{mynn_forward.1} parent=11 // pred_fallthru
        _
      // Predicated region
      $region29: #{mynn_forward.1} parent=11 // pred_check
        %p218 = pneg %p144
      $region30: #{mynn_forward.1} parent=11 // pred_check_branch
        %220 = sbr.rel (%p218) target = $region32
      $region31: #{mynn_forward.1} parent=11 // pred_region
        _
      $region32: #{mynn_forward.1} parent=11 // pred_fallthru
        _
      // Predicated region
      $region33: #{mynn_forward.1} parent=11 // pred_check
        %p221 = pneg %p165
      $region34: #{mynn_forward.1} parent=11 // pred_check_branch
        %223 = sbr.rel (%p221) target = $region36
      $region35: #{mynn_forward.1} parent=11 // pred_region
        _
      $region36: #{mynn_forward.1} parent=11 // pred_fallthru
        _
    $region12: #{mynn_forward.1} parent=5 // pred_fallthru
      _
    %p224 = scmp.lt.s32.totalorder %s13, 3
    // Predicated region
    $region37: #{mynn_forward.1} parent=5 // pred_check
      %p225 = pneg %p224
    $region38: #{mynn_forward.1} parent=5 // pred_check_branch
      %227 = sbr.rel (%p225) target = $region40
    $region39: #{mynn_forward.1} parent=5 // pred_region
      // Predicated region
      $region41: #{mynn_forward.1} parent=39 // pred_check
        %p228 = pneg %p33
      $region42: #{mynn_forward.1} parent=39 // pred_check_branch
        %230 = sbr.rel (%p228) target = $region44
      $region43: #{mynn_forward.1} parent=39 // pred_region
        %s231 = smul.u32 16, %s13
        %p232 = scmp.lt.s32.totalorder %s231, 47
        %s233 = scalar_select %p232, %s231, 47
        %s234 = smul.addr %s233, 2
        %s235 = smul.addr %s234, 4
        %s236 = scalar_lea.vmem %s0, %s235
        %s237 = smul.u32 16, %s13
      $region44: #{mynn_forward.1} parent=39 // pred_fallthru
        _
    $region40: #{mynn_forward.1} parent=5 // pred_fallthru
      _
    %p238 = scmp.le.s32.totalorder 1, %s13
    %p239 = scmp.lt.s32.totalorder %s13, 4
    %p240 = pnand %p238, %p239
    %p241 = pneg %p240
    // Predicated region
    $region45: #{mynn_forward.1} parent=5 // pred_check
      _
    $region46: #{mynn_forward.1} parent=5 // pred_check_branch
      %243 = sbr.rel (%p240) target = $region48
    $region47: #{mynn_forward.1} parent=5 // pred_region
      %s244 = ssub.s32 %s13, 1
      %s245 = smul.u32 16, %s18
      %p246 = scmp.lt.s32.totalorder %s245, 47
      %s247 = scalar_select %p246, %s245, 47
      %s248 = smul.addr %s247, 2
      %s249 = smul.addr %s248, 4
      %s250 = scalar_lea.vmem %s0, %s249
      %p251 = pneg %p39
      %p252 = pneg %p36
      %p253 = pneg %p60
      %p254 = pneg %p57
      %p255 = pneg %p81
      %p256 = pneg %p78
      %p257 = pneg %p102
      %p258 = pneg %p99
      %p259 = pneg %p123
      %p260 = pneg %p120
      %p261 = pneg %p144
      %p262 = pneg %p141
      %p263 = pneg %p165
      %p264 = pneg %p162
      %p265 = pneg %p191
      %p266 = pneg %p188
      %s267 = smul.u32 16, %s18
      %p268 = scmp.lt.s32.totalorder %s267, 47
      %s269 = scalar_select %p268, %s267, 47
      %s270 = smul.addr %s269, 8
      %s271 = scalar_lea.vmem %s7, %s270
      %s272 = smul.u32 16, %s18
      %p273 = scmp.lt.s32.totalorder %s272, 47
      %s274 = scalar_select %p273, %s272, 47
      %s275 = smul.addr %s274, 2
      %s276 = smul.addr %s275, 4
      %s277 = scalar_lea.vmem %s0, %s276
      %s278 = smul.u32 16, %s18
      %s279 = smul.u32 16, %s18
      %p280 = scmp.lt.s32.totalorder %s279, 47
      %s281 = scalar_select %p280, %s279, 47
      %s282 = smul.addr %s281, 8
      %s283 = scalar_lea.vmem %s7, %s282
      %s284 = smul.u32 16, %s18
      %v286 = vld [vmem:[%s277] sm:$0xff]
      %v287 = vld [vmem:[%s277 + $0x8] sm:$0xff]
      %v288 = vld [vmem:[%s277 + $0x10] sm:$0xff]
      %v289 = vld [vmem:[%s277 + $0x18] sm:$0xff]
      %v290 = vld [vmem:[%s277 + $0x20] sm:$0xff]
      %v291 = vld [vmem:[%s277 + $0x28] sm:$0xff]
      %v292 = vld [vmem:[%s277 + $0x30] sm:$0xff]
      %v293 = vld [vmem:[%s277 + $0x38] sm:$0xff]
      %v294 = vld [vmem:[%s277 + $0x40] sm:$0xff]
      %v295 = vld [vmem:[%s277 + $0x48] sm:$0xff]
      %v296 = vld [vmem:[%s277 + $0x50] sm:$0xff]
      %v297 = vld [vmem:[%s277 + $0x58] sm:$0xff]
      %v298 = vld [vmem:[%s277 + $0x60] sm:$0xff]
      %v299 = vld [vmem:[%s277 + $0x68] sm:$0xff]
      %v300 = vld [vmem:[%s277 + $0x70] sm:$0xff]
      %v301 = vld [vmem:[%s277 + $0x78] sm:$0xff]
      %v302 = vld [vmem:[%s1] sm:$0xf]
      %v303 = vld [vmem:[%s1 + $0x4] sm:$0xf]
      %v304 = vld [vmem:[%s1 + $0x8] sm:$0xf]
      %v305 = vld [vmem:[%s1 + $0xc] sm:$0xf]
      %v306 = vld [vmem:[%s1 + $0x10] sm:$0xf]
      %v307 = vld [vmem:[%s1 + $0x14] sm:$0xf]
      %v308 = vld [vmem:[%s1 + $0x18] sm:$0xf]
      %v309 = vld [vmem:[%s1 + $0x1c] sm:$0xf]
      %v310 = vld [vmem:[%s1 + $0x20] sm:$0xf]
      %v311 = vld [vmem:[%s1 + $0x24] sm:$0xf]
      %v312 = vld [vmem:[%s1 + $0x28] sm:$0xf]
      %v313 = vld [vmem:[%s1 + $0x2c] sm:$0xf]
      %v314 = vld [vmem:[%s1 + $0x30] sm:$0xf]
      %v315 = vld [vmem:[%s1 + $0x34] sm:$0xf]
      %v316 = vld [vmem:[%s1 + $0x38] sm:$0xf]
      %v317 = vld [vmem:[%s1 + $0x3c] sm:$0xf]
      %v318 = vld [vmem:[%s1 + $0x40] sm:$0xf]
      %v319 = vld [vmem:[%s1 + $0x44] sm:$0xf]
      %v320 = vld [vmem:[%s1 + $0x48] sm:$0xf]
      %v321 = vld [vmem:[%s1 + $0x4c] sm:$0xf]
      %v322 = vld [vmem:[%s1 + $0x50] sm:$0xf]
      %v323 = vld [vmem:[%s1 + $0x54] sm:$0xf]
      %v324 = vld [vmem:[%s1 + $0x58] sm:$0xf]
      %v325 = vld [vmem:[%s1 + $0x5c] sm:$0xf]
      %v326 = vld [vmem:[%s1 + $0x60] sm:$0xf]
      %v327 = vld [vmem:[%s1 + $0x64] sm:$0xf]
      %v328 = vld [vmem:[%s1 + $0x68] sm:$0xf]
      %v329 = vld [vmem:[%s1 + $0x6c] sm:$0xf]
      %v330 = vld [vmem:[%s1 + $0x70] sm:$0xf]
      %v331 = vld [vmem:[%s1 + $0x74] sm:$0xf]
      %v332 = vld [vmem:[%s1 + $0x78] sm:$0xf]
      %v333 = vld [vmem:[%s1 + $0x7c] sm:$0xf]
      %v334 = vld [vmem:[%s2] sm:$0x1]
      %v336 = vlaneseq
      %v337 = vshrl.u32 %v336, 7
      %v338 = vsub.s32 0, %v337
      %v339 = vrot.slane %v334, %v338
      %v357 = vunpack.c.l.b16 %v286
      %v358 = vunpack.c.h.b16 %v286
      %v359 = vunpack.c.l.b16 %v287
      %v360 = vunpack.c.h.b16 %v287
      %v361 = vunpack.c.l.b16 %v288
      %v362 = vunpack.c.h.b16 %v288
      %v363 = vunpack.c.l.b16 %v289
      %v364 = vunpack.c.h.b16 %v289
      %v365 = vunpack.c.l.b16 %v290
      %v366 = vunpack.c.h.b16 %v290
      %v367 = vunpack.c.l.b16 %v291
      %v368 = vunpack.c.h.b16 %v291
      %v369 = vunpack.c.l.b16 %v292
      %v370 = vunpack.c.h.b16 %v292
      %v371 = vunpack.c.l.b16 %v293
      %v372 = vunpack.c.h.b16 %v293
      %v373 = vunpack.c.l.b16 %v294
      %v374 = vunpack.c.h.b16 %v294
      %v375 = vunpack.c.l.b16 %v295
      %v376 = vunpack.c.h.b16 %v295
      %v377 = vunpack.c.l.b16 %v296
      %v378 = vunpack.c.h.b16 %v296
      %v379 = vunpack.c.l.b16 %v297
      %v380 = vunpack.c.h.b16 %v297
      %v381 = vunpack.c.l.b16 %v298
      %v382 = vunpack.c.h.b16 %v298
      %v383 = vunpack.c.l.b16 %v299
      %v384 = vunpack.c.h.b16 %v299
      %v385 = vunpack.c.l.b16 %v300
      %v386 = vunpack.c.h.b16 %v300
      %v387 = vunpack.c.l.b16 %v301
      %v388 = vunpack.c.h.b16 %v301
      %v389 = vpack.c.b16 %v359, %v357
      %v390 = vpack.c.b16 %v360, %v358
      %v391 = vpack.c.b16 %v363, %v361
      %v392 = vpack.c.b16 %v364, %v362
      %v393 = vpack.c.b16 %v367, %v365
      %v394 = vpack.c.b16 %v368, %v366
      %v395 = vpack.c.b16 %v371, %v369
      %v396 = vpack.c.b16 %v372, %v370
      %v397 = vpack.c.b16 %v375, %v373
      %v398 = vpack.c.b16 %v376, %v374
      %v399 = vpack.c.b16 %v379, %v377
      %v400 = vpack.c.b16 %v380, %v378
      %v401 = vpack.c.b16 %v383, %v381
      %v402 = vpack.c.b16 %v384, %v382
      %v403 = vpack.c.b16 %v387, %v385
      %v404 = vpack.c.b16 %v388, %v386
      %v453 = vunpack.c.l.b16 %v302
      %v454 = vunpack.c.l.b16 %v303
      %v455 = vunpack.c.l.b16 %v304
      %v456 = vunpack.c.l.b16 %v305
      %v457 = vunpack.c.l.b16 %v306
      %v458 = vunpack.c.l.b16 %v307
      %v459 = vunpack.c.l.b16 %v308
      %v460 = vunpack.c.l.b16 %v309
      %v461 = vunpack.c.l.b16 %v310
      %v462 = vunpack.c.l.b16 %v311
      %v463 = vunpack.c.l.b16 %v312
      %v464 = vunpack.c.l.b16 %v313
      %v465 = vunpack.c.l.b16 %v314
      %v466 = vunpack.c.l.b16 %v315
      %v467 = vunpack.c.l.b16 %v316
      %v468 = vunpack.c.l.b16 %v317
      %v469 = vunpack.c.l.b16 %v318
      %v470 = vunpack.c.l.b16 %v319
      %v471 = vunpack.c.l.b16 %v320
      %v472 = vunpack.c.l.b16 %v321
      %v473 = vunpack.c.l.b16 %v322
      %v474 = vunpack.c.l.b16 %v323
      %v475 = vunpack.c.l.b16 %v324
      %v476 = vunpack.c.l.b16 %v325
      %v477 = vunpack.c.l.b16 %v326
      %v478 = vunpack.c.l.b16 %v327
      %v479 = vunpack.c.l.b16 %v328
      %v480 = vunpack.c.l.b16 %v329
      %v481 = vunpack.c.l.b16 %v330
      %v482 = vunpack.c.l.b16 %v331
      %v483 = vunpack.c.l.b16 %v332
      %v484 = vunpack.c.l.b16 %v333
      %v485 = vpack.c.b16 %v454, %v453
      %v486 = vpack.c.b16 %v456, %v455
      %v487 = vpack.c.b16 %v458, %v457
      %v488 = vpack.c.b16 %v460, %v459
      %v489 = vpack.c.b16 %v462, %v461
      %v490 = vpack.c.b16 %v464, %v463
      %v491 = vpack.c.b16 %v466, %v465
      %v492 = vpack.c.b16 %v468, %v467
      %v493 = vpack.c.b16 %v470, %v469
      %v494 = vpack.c.b16 %v472, %v471
      %v495 = vpack.c.b16 %v474, %v473
      %v496 = vpack.c.b16 %v476, %v475
      %v497 = vpack.c.b16 %v478, %v477
      %v498 = vpack.c.b16 %v480, %v479
      %v499 = vpack.c.b16 %v482, %v481
      %v500 = vpack.c.b16 %v484, %v483
      %517 = vmatprep.subr.bf16.mxu0 0
      %518 = vmatpush1.bf16.msra.mxu0 %v485
      %519 = vmatprep.subr.bf16.mxu0 0
      %520 = vmatpush1.bf16.msra.mxu0 %v486
      %521 = vmatprep.subr.bf16.mxu0 0
      %522 = vmatpush1.bf16.msra.mxu0 %v487
      %523 = vmatprep.subr.bf16.mxu0 0
      %524 = vmatpush1.bf16.msra.mxu0 %v488
      %525 = vmatprep.subr.bf16.mxu0 0
      %526 = vmatpush1.bf16.msra.mxu0 %v489
      %527 = vmatprep.subr.bf16.mxu0 0
      %528 = vmatpush1.bf16.msra.mxu0 %v490
      %529 = vmatprep.subr.bf16.mxu0 0
      %530 = vmatpush1.bf16.msra.mxu0 %v491
      %531 = vmatprep.subr.bf16.mxu0 0
      %532 = vmatpush1.bf16.msra.mxu0 %v492
      %533 = vmatprep.subr.bf16.mxu0 0
      %534 = vmatpush1.bf16.msra.mxu0 %v493
      %535 = vmatprep.subr.bf16.mxu0 0
      %536 = vmatpush1.bf16.msra.mxu0 %v494
      %537 = vmatprep.subr.bf16.mxu0 0
      %538 = vmatpush1.bf16.msra.mxu0 %v495
      %539 = vmatprep.subr.bf16.mxu0 0
      %540 = vmatpush1.bf16.msra.mxu0 %v496
      %541 = vmatprep.subr.bf16.mxu0 0
      %542 = vmatpush1.bf16.msra.mxu0 %v497
      %543 = vmatprep.subr.bf16.mxu0 0
      %544 = vmatpush1.bf16.msra.mxu0 %v498
      %545 = vmatprep.subr.bf16.mxu0 0
      %546 = vmatpush1.bf16.msra.mxu0 %v499
      %547 = vmatprep.subr.bf16.mxu0 0
      %548 = vmatpush1.bf16.msra.mxu0 %v500
      %549 = vmatprep.mubr.bf16.mxu0 %v390
      %550 = vmatmul.mubr.bf16.gmra.mrb[0].mxu0 %v389
      %v551 = vpop.f32.mrb[0].mxu0
      %v552 = vadd.f32 %v339, %v551
      %v553 = vpop.f32.mrb[0].mxu0
      %v554 = vpop.f32.mrb[0].mxu0
      %v555 = vadd.f32 %v339, %v554
      %v556 = vpop.f32.mrb[0].mxu0
      %557 = vmatprep.mubr.bf16.mxu0 %v392
      %558 = vmatmul.mubr.bf16.gmra.mrb[0].mxu0 %v391
      %v559 = vpop.f32.mrb[0].mxu0
      %v560 = vadd.f32 %v339, %v559
      %v561 = vpop.f32.mrb[0].mxu0
      %v562 = vpop.f32.mrb[0].mxu0
      %v563 = vadd.f32 %v339, %v562
      %v564 = vpop.f32.mrb[0].mxu0
      %565 = vmatprep.mubr.bf16.mxu0 %v394
      %566 = vmatmul.mubr.bf16.gmra.mrb[0].mxu0 %v393
      %v567 = vpop.f32.mrb[0].mxu0
      %v568 = vadd.f32 %v339, %v567
      %v569 = vpop.f32.mrb[0].mxu0
      %v570 = vpop.f32.mrb[0].mxu0
      %v571 = vadd.f32 %v339, %v570
      %v572 = vpop.f32.mrb[0].mxu0
      %573 = vmatprep.mubr.bf16.mxu0 %v396
      %574 = vmatmul.mubr.bf16.gmra.mrb[0].mxu0 %v395
      %v575 = vpop.f32.mrb[0].mxu0
      %v576 = vadd.f32 %v339, %v575
      %v577 = vpop.f32.mrb[0].mxu0
      %v578 = vpop.f32.mrb[0].mxu0
      %v579 = vadd.f32 %v339, %v578
      %v580 = vpop.f32.mrb[0].mxu0
      %581 = vmatprep.mubr.bf16.mxu0 %v398
      %582 = vmatmul.mubr.bf16.gmra.mrb[0].mxu0 %v397
      %v583 = vpop.f32.mrb[0].mxu0
      %v584 = vadd.f32 %v339, %v583
      %v585 = vpop.f32.mrb[0].mxu0
      %v586 = vpop.f32.mrb[0].mxu0
      %v587 = vadd.f32 %v339, %v586
      %v588 = vpop.f32.mrb[0].mxu0
      %589 = vmatprep.mubr.bf16.mxu0 %v400
      %590 = vmatmul.mubr.bf16.gmra.mrb[0].mxu0 %v399
      %v591 = vpop.f32.mrb[0].mxu0
      %v592 = vadd.f32 %v339, %v591
      %v593 = vpop.f32.mrb[0].mxu0
      %v594 = vpop.f32.mrb[0].mxu0
      %v595 = vadd.f32 %v339, %v594
      %v596 = vpop.f32.mrb[0].mxu0
      %597 = vmatprep.mubr.bf16.mxu0 %v402
      %598 = vmatmul.mubr.bf16.gmra.mrb[0].mxu0 %v401
      %v599 = vpop.f32.mrb[0].mxu0
      %v600 = vadd.f32 %v339, %v599
      %v601 = vpop.f32.mrb[0].mxu0
      %v602 = vpop.f32.mrb[0].mxu0
      %v603 = vadd.f32 %v339, %v602
      %v604 = vpop.f32.mrb[0].mxu0
      %605 = vmatprep.mubr.bf16.mxu0 %v404
      %606 = vmatmul.mubr.bf16.gmra.mrb[0].mxu0 %v403
      %v607 = vpop.f32.mrb[0].mxu0
      %v608 = vadd.f32 %v339, %v607
      %v609 = vpop.f32.mrb[0].mxu0
      %v610 = vpop.f32.mrb[0].mxu0
      %v611 = vadd.f32 %v339, %v610
      %v612 = vpop.f32.mrb[0].mxu0
      %613 = vdwg.mxu0
      %v614 = vmax.f32 %v552, 0.0
      %v615 = vmax.f32 %v555, 0.0
      %v616 = vmax.f32 %v560, 0.0
      %v617 = vmax.f32 %v563, 0.0
      %v618 = vmax.f32 %v568, 0.0
      %v619 = vmax.f32 %v571, 0.0
      %v620 = vmax.f32 %v576, 0.0
      %v621 = vmax.f32 %v579, 0.0
      %v622 = vmax.f32 %v584, 0.0
      %v623 = vmax.f32 %v587, 0.0
      %v624 = vmax.f32 %v592, 0.0
      %v625 = vmax.f32 %v595, 0.0
      %v626 = vmax.f32 %v600, 0.0
      %v627 = vmax.f32 %v603, 0.0
      %v628 = vmax.f32 %v608, 0.0
      %v629 = vmax.f32 %v611, 0.0
      %v630 = vpack.c.bf16 %v615, %v614
      %v631 = vpack.c.bf16 %v617, %v616
      %v632 = vpack.c.bf16 %v619, %v618
      %v633 = vpack.c.bf16 %v621, %v620
      %v634 = vpack.c.bf16 %v623, %v622
      %v635 = vpack.c.bf16 %v625, %v624
      %v636 = vpack.c.bf16 %v627, %v626
      %v637 = vpack.c.bf16 %v629, %v628
      %v638 = vld [vmem:[%s3] sm:$0xf]
      %v639 = vld [vmem:[%s3 + $0x4] sm:$0xf]
      %v640 = vld [vmem:[%s3 + $0x8] sm:$0xf]
      %v641 = vld [vmem:[%s3 + $0xc] sm:$0xf]
      %v642 = vld [vmem:[%s3 + $0x10] sm:$0xf]
      %v643 = vld [vmem:[%s3 + $0x14] sm:$0xf]
      %v644 = vld [vmem:[%s3 + $0x18] sm:$0xf]
      %v645 = vld [vmem:[%s3 + $0x1c] sm:$0xf]
      %v646 = vld [vmem:[%s3 + $0x20] sm:$0xf]
      %v647 = vld [vmem:[%s3 + $0x24] sm:$0xf]
      %v648 = vld [vmem:[%s3 + $0x28] sm:$0xf]
      %v649 = vld [vmem:[%s3 + $0x2c] sm:$0xf]
      %v650 = vld [vmem:[%s3 + $0x30] sm:$0xf]
      %v651 = vld [vmem:[%s3 + $0x34] sm:$0xf]
      %v652 = vld [vmem:[%s3 + $0x38] sm:$0xf]
      %v653 = vld [vmem:[%s3 + $0x3c] sm:$0xf]
      %v654 = vld [vmem:[%s4] sm:$0x1]
      %v656 = vlaneseq
      %v657 = vshrl.u32 %v656, 7
      %v658 = vsub.s32 0, %v657
      %v659 = vrot.slane %v654, %v658
      %v677 = vunpack.c.l.b16 %v638
      %v678 = vunpack.c.l.b16 %v639
      %v679 = vunpack.c.l.b16 %v640
      %v680 = vunpack.c.l.b16 %v641
      %v681 = vunpack.c.l.b16 %v642
      %v682 = vunpack.c.l.b16 %v643
      %v683 = vunpack.c.l.b16 %v644
      %v684 = vunpack.c.l.b16 %v645
      %v685 = vunpack.c.l.b16 %v646
      %v686 = vunpack.c.l.b16 %v647
      %v687 = vunpack.c.l.b16 %v648
      %v688 = vunpack.c.l.b16 %v649
      %v689 = vunpack.c.l.b16 %v650
      %v690 = vunpack.c.l.b16 %v651
      %v691 = vunpack.c.l.b16 %v652
      %v692 = vunpack.c.l.b16 %v653
      %v693 = vpack.c.b16 %v678, %v677
      %v694 = vpack.c.b16 %v680, %v679
      %v695 = vpack.c.b16 %v682, %v681
      %v696 = vpack.c.b16 %v684, %v683
      %v697 = vpack.c.b16 %v686, %v685
      %v698 = vpack.c.b16 %v688, %v687
      %v699 = vpack.c.b16 %v690, %v689
      %v700 = vpack.c.b16 %v692, %v691
      %709 = vmatprep.subr.bf16.mxu0 0
      %710 = vmatpush1.bf16.msra.mxu0 %v693
      %711 = vmatprep.subr.bf16.mxu0 0
      %712 = vmatpush1.bf16.msra.mxu0 %v694
      %713 = vmatprep.subr.bf16.mxu0 0
      %714 = vmatpush1.bf16.msra.mxu0 %v695
      %715 = vmatprep.subr.bf16.mxu0 0
      %716 = vmatpush1.bf16.msra.mxu0 %v696
      %717 = vmatprep.subr.bf16.mxu0 0
      %718 = vmatpush1.bf16.msra.mxu0 %v697
      %719 = vmatprep.subr.bf16.mxu0 0
      %720 = vmatpush1.bf16.msra.mxu0 %v698
      %721 = vmatprep.subr.bf16.mxu0 0
      %722 = vmatpush1.bf16.msra.mxu0 %v699
      %723 = vmatprep.subr.bf16.mxu0 0
      %724 = vmatpush1.bf16.msra.mxu0 %v700
      %725 = vmatprep.subr.bf16.mxu0 0
      %726 = vmatpush1.bf16.msra.mxu0 0
      %727 = vmatprep.subr.bf16.mxu0 0
      %728 = vmatpush1.bf16.msra.mxu0 0
      %729 = vmatprep.subr.bf16.mxu0 0
      %730 = vmatpush1.bf16.msra.mxu0 0
      %731 = vmatprep.subr.bf16.mxu0 0
      %732 = vmatpush1.bf16.msra.mxu0 0
      %733 = vmatprep.subr.bf16.mxu0 0
      %734 = vmatpush1.bf16.msra.mxu0 0
      %735 = vmatprep.subr.bf16.mxu0 0
      %736 = vmatpush1.bf16.msra.mxu0 0
      %737 = vmatprep.subr.bf16.mxu0 0
      %738 = vmatpush1.bf16.msra.mxu0 0
      %739 = vmatprep.subr.bf16.mxu0 0
      %740 = vmatpush1.bf16.msra.mxu0 0
      %741 = vmatprep.mubr.bf16.mxu0 0
      %742 = vmatmul.mubr.bf16.gmra.mrb[0].mxu0 %v630
      %v743 = vpop.f32.mrb[0].mxu0
      %v744 = vadd.f32 %v659, %v743
      %v745 = vpop.f32.mrb[0].mxu0
      %v746 = vpop.f32.mrb[0].mxu0
      %v747 = vadd.f32 %v659, %v746
      %v748 = vpop.f32.mrb[0].mxu0
      %749 = vmatprep.mubr.bf16.mxu0 0
      %750 = vmatmul.mubr.bf16.gmra.mrb[0].mxu0 %v631
      %v751 = vpop.f32.mrb[0].mxu0
      %v752 = vadd.f32 %v659, %v751
      %v753 = vpop.f32.mrb[0].mxu0
      %v754 = vpop.f32.mrb[0].mxu0
      %v755 = vadd.f32 %v659, %v754
      %v756 = vpop.f32.mrb[0].mxu0
      %757 = vmatprep.mubr.bf16.mxu0 0
      %758 = vmatmul.mubr.bf16.gmra.mrb[0].mxu0 %v632
      %v759 = vpop.f32.mrb[0].mxu0
      %v760 = vadd.f32 %v659, %v759
      %v761 = vpop.f32.mrb[0].mxu0
      %v762 = vpop.f32.mrb[0].mxu0
      %v763 = vadd.f32 %v659, %v762
      %v764 = vpop.f32.mrb[0].mxu0
      %765 = vmatprep.mubr.bf16.mxu0 0
      %766 = vmatmul.mubr.bf16.gmra.mrb[0].mxu0 %v633
      %v767 = vpop.f32.mrb[0].mxu0
      %v768 = vadd.f32 %v659, %v767
      %v769 = vpop.f32.mrb[0].mxu0
      %v770 = vpop.f32.mrb[0].mxu0
      %v771 = vadd.f32 %v659, %v770
      %v772 = vpop.f32.mrb[0].mxu0
      %773 = vmatprep.mubr.bf16.mxu0 0
      %774 = vmatmul.mubr.bf16.gmra.mrb[0].mxu0 %v634
      %v775 = vpop.f32.mrb[0].mxu0
      %v776 = vadd.f32 %v659, %v775
      %v777 = vpop.f32.mrb[0].mxu0
      %v778 = vpop.f32.mrb[0].mxu0
      %v779 = vadd.f32 %v659, %v778
      %v780 = vpop.f32.mrb[0].mxu0
      %781 = vmatprep.mubr.bf16.mxu0 0
      %782 = vmatmul.mubr.bf16.gmra.mrb[0].mxu0 %v635
      %v783 = vpop.f32.mrb[0].mxu0
      %v784 = vadd.f32 %v659, %v783
      %v785 = vpop.f32.mrb[0].mxu0
      %v786 = vpop.f32.mrb[0].mxu0
      %v787 = vadd.f32 %v659, %v786
      %v788 = vpop.f32.mrb[0].mxu0
      %789 = vmatprep.mubr.bf16.mxu0 0
      %790 = vmatmul.mubr.bf16.gmra.mrb[0].mxu0 %v636
      %v791 = vpop.f32.mrb[0].mxu0
      %v792 = vadd.f32 %v659, %v791
      %v793 = vpop.f32.mrb[0].mxu0
      %v794 = vpop.f32.mrb[0].mxu0
      %v795 = vadd.f32 %v659, %v794
      %v796 = vpop.f32.mrb[0].mxu0
      %797 = vmatprep.mubr.bf16.mxu0 0
      %798 = vmatmul.mubr.bf16.gmra.mrb[0].mxu0 %v637
      %v799 = vpop.f32.mrb[0].mxu0
      %v800 = vadd.f32 %v659, %v799
      %v801 = vpop.f32.mrb[0].mxu0
      %v802 = vpop.f32.mrb[0].mxu0
      %v803 = vadd.f32 %v659, %v802
      %v804 = vpop.f32.mrb[0].mxu0
      %805 = vdwg.mxu0
      %v806 = vmax.f32 %v744, 0.0
      %v807 = vmax.f32 %v747, 0.0
      %v808 = vmax.f32 %v752, 0.0
      %v809 = vmax.f32 %v755, 0.0
      %v810 = vmax.f32 %v760, 0.0
      %v811 = vmax.f32 %v763, 0.0
      %v812 = vmax.f32 %v768, 0.0
      %v813 = vmax.f32 %v771, 0.0
      %v814 = vmax.f32 %v776, 0.0
      %v815 = vmax.f32 %v779, 0.0
      %v816 = vmax.f32 %v784, 0.0
      %v817 = vmax.f32 %v787, 0.0
      %v818 = vmax.f32 %v792, 0.0
      %v819 = vmax.f32 %v795, 0.0
      %v820 = vmax.f32 %v800, 0.0
      %v821 = vmax.f32 %v803, 0.0
      %v822 = vpack.c.bf16 %v807, %v806
      %v823 = vpack.c.bf16 %v809, %v808
      %v824 = vpack.c.bf16 %v811, %v810
      %v825 = vpack.c.bf16 %v813, %v812
      %v826 = vpack.c.bf16 %v815, %v814
      %v827 = vpack.c.bf16 %v817, %v816
      %v828 = vpack.c.bf16 %v819, %v818
      %v829 = vpack.c.bf16 %v821, %v820
      %v830 = vld [vmem:[%s5] sm:$0xf]
      %v831 = vld [vmem:[%s5 + $0x4] sm:$0xf]
      %v832 = vld [vmem:[%s5 + $0x8] sm:$0xf]
      %v833 = vld [vmem:[%s5 + $0xc] sm:$0xf]
      %v834 = vld [vmem:[%s5 + $0x10] sm:$0xf]
      %v835 = vld [vmem:[%s5 + $0x14] sm:$0xf]
      %v836 = vld [vmem:[%s5 + $0x18] sm:$0xf]
      %v837 = vld [vmem:[%s5 + $0x1c] sm:$0xf]
      %v838 = vld [vmem:[%s5 + $0x20] sm:$0xf]
      %v839 = vld [vmem:[%s5 + $0x24] sm:$0xf]
      %v840 = vld [vmem:[%s5 + $0x28] sm:$0xf]
      %v841 = vld [vmem:[%s5 + $0x2c] sm:$0xf]
      %v842 = vld [vmem:[%s5 + $0x30] sm:$0xf]
      %v843 = vld [vmem:[%s5 + $0x34] sm:$0xf]
      %v844 = vld [vmem:[%s5 + $0x38] sm:$0xf]
      %v845 = vld [vmem:[%s5 + $0x3c] sm:$0xf]
      %v846 = vld [vmem:[%s6] sm:$0x1]
      %v848 = vlaneseq
      %v849 = vshrl.u32 %v848, 7
      %v850 = vsub.s32 0, %v849
      %v851 = vrot.slane %v846, %v850
      %v869 = vunpack.c.l.b16 %v830
      %v870 = vunpack.c.l.b16 %v831
      %v871 = vunpack.c.l.b16 %v832
      %v872 = vunpack.c.l.b16 %v833
      %v873 = vunpack.c.l.b16 %v834
      %v874 = vunpack.c.l.b16 %v835
      %v875 = vunpack.c.l.b16 %v836
      %v876 = vunpack.c.l.b16 %v837
      %v877 = vunpack.c.l.b16 %v838
      %v878 = vunpack.c.l.b16 %v839
      %v879 = vunpack.c.l.b16 %v840
      %v880 = vunpack.c.l.b16 %v841
      %v881 = vunpack.c.l.b16 %v842
      %v882 = vunpack.c.l.b16 %v843
      %v883 = vunpack.c.l.b16 %v844
      %v884 = vunpack.c.l.b16 %v845
      %v885 = vpack.c.b16 %v870, %v869
      %v886 = vpack.c.b16 %v872, %v871
      %v887 = vpack.c.b16 %v874, %v873
      %v888 = vpack.c.b16 %v876, %v875
      %v889 = vpack.c.b16 %v878, %v877
      %v890 = vpack.c.b16 %v880, %v879
      %v891 = vpack.c.b16 %v882, %v881
      %v892 = vpack.c.b16 %v884, %v883
      %901 = vmatprep.subr.bf16.mxu0 0
      %902 = vmatpush1.bf16.msra.mxu0 %v885
      %903 = vmatprep.subr.bf16.mxu0 0
      %904 = vmatpush1.bf16.msra.mxu0 %v886
      %905 = vmatprep.subr.bf16.mxu0 0
      %906 = vmatpush1.bf16.msra.mxu0 %v887
      %907 = vmatprep.subr.bf16.mxu0 0
      %908 = vmatpush1.bf16.msra.mxu0 %v888
      %909 = vmatprep.subr.bf16.mxu0 0
      %910 = vmatpush1.bf16.msra.mxu0 %v889
      %911 = vmatprep.subr.bf16.mxu0 0
      %912 = vmatpush1.bf16.msra.mxu0 %v890
      %913 = vmatprep.subr.bf16.mxu0 0
      %914 = vmatpush1.bf16.msra.mxu0 %v891
      %915 = vmatprep.subr.bf16.mxu0 0
      %916 = vmatpush1.bf16.msra.mxu0 %v892
      %917 = vmatprep.subr.bf16.mxu0 0
      %918 = vmatpush1.bf16.msra.mxu0 0
      %919 = vmatprep.subr.bf16.mxu0 0
      %920 = vmatpush1.bf16.msra.mxu0 0
      %921 = vmatprep.subr.bf16.mxu0 0
      %922 = vmatpush1.bf16.msra.mxu0 0
      %923 = vmatprep.subr.bf16.mxu0 0
      %924 = vmatpush1.bf16.msra.mxu0 0
      %925 = vmatprep.subr.bf16.mxu0 0
      %926 = vmatpush1.bf16.msra.mxu0 0
      %927 = vmatprep.subr.bf16.mxu0 0
      %928 = vmatpush1.bf16.msra.mxu0 0
      %929 = vmatprep.subr.bf16.mxu0 0
      %930 = vmatpush1.bf16.msra.mxu0 0
      %931 = vmatprep.subr.bf16.mxu0 0
      %932 = vmatpush1.bf16.msra.mxu0 0
      %933 = vmatprep.mubr.bf16.mxu0 0
      %934 = vmatmul.mubr.bf16.gmra.mrb[0].mxu0 %v822
      %v935 = vpop.f32.mrb[0].mxu0
      %v936 = vadd.f32 %v851, %v935
      %v937 = vpop.f32.mrb[0].mxu0
      %v938 = vpop.f32.mrb[0].mxu0
      %v939 = vadd.f32 %v851, %v938
      %v940 = vpop.f32.mrb[0].mxu0
      %941 = vmatprep.mubr.bf16.mxu0 0
      %942 = vmatmul.mubr.bf16.gmra.mrb[0].mxu0 %v823
      %v943 = vpop.f32.mrb[0].mxu0
      %v944 = vadd.f32 %v851, %v943
      %v945 = vpop.f32.mrb[0].mxu0
      %v946 = vpop.f32.mrb[0].mxu0
      %v947 = vadd.f32 %v851, %v946
      %v948 = vpop.f32.mrb[0].mxu0
      %949 = vmatprep.mubr.bf16.mxu0 0
      %950 = vmatmul.mubr.bf16.gmra.mrb[0].mxu0 %v824
      %v951 = vpop.f32.mrb[0].mxu0
      %v952 = vadd.f32 %v851, %v951
      %v953 = vpop.f32.mrb[0].mxu0
      %v954 = vpop.f32.mrb[0].mxu0
      %v955 = vadd.f32 %v851, %v954
      %v956 = vpop.f32.mrb[0].mxu0
      %957 = vmatprep.mubr.bf16.mxu0 0
      %958 = vmatmul.mubr.bf16.gmra.mrb[0].mxu0 %v825
      %v959 = vpop.f32.mrb[0].mxu0
      %v960 = vadd.f32 %v851, %v959
      %v961 = vpop.f32.mrb[0].mxu0
      %v962 = vpop.f32.mrb[0].mxu0
      %v963 = vadd.f32 %v851, %v962
      %v964 = vpop.f32.mrb[0].mxu0
      %965 = vmatprep.mubr.bf16.mxu0 0
      %966 = vmatmul.mubr.bf16.gmra.mrb[0].mxu0 %v826
      %v967 = vpop.f32.mrb[0].mxu0
      %v968 = vadd.f32 %v851, %v967
      %v969 = vpop.f32.mrb[0].mxu0
      %v970 = vpop.f32.mrb[0].mxu0
      %v971 = vadd.f32 %v851, %v970
      %v972 = vpop.f32.mrb[0].mxu0
      %973 = vmatprep.mubr.bf16.mxu0 0
      %974 = vmatmul.mubr.bf16.gmra.mrb[0].mxu0 %v827
      %v975 = vpop.f32.mrb[0].mxu0
      %v976 = vadd.f32 %v851, %v975
      %v977 = vpop.f32.mrb[0].mxu0
      %v978 = vpop.f32.mrb[0].mxu0
      %v979 = vadd.f32 %v851, %v978
      %v980 = vpop.f32.mrb[0].mxu0
      %981 = vmatprep.mubr.bf16.mxu0 0
      %982 = vmatmul.mubr.bf16.gmra.mrb[0].mxu0 %v828
      %v983 = vpop.f32.mrb[0].mxu0
      %v984 = vadd.f32 %v851, %v983
      %v985 = vpop.f32.mrb[0].mxu0
      %v986 = vpop.f32.mrb[0].mxu0
      %v987 = vadd.f32 %v851, %v986
      %v988 = vpop.f32.mrb[0].mxu0
      %989 = vmatprep.mubr.bf16.mxu0 0
      %990 = vmatmul.mubr.bf16.gmra.mrb[0].mxu0 %v829
      %v991 = vpop.f32.mrb[0].mxu0
      %v992 = vadd.f32 %v851, %v991
      %v993 = vpop.f32.mrb[0].mxu0
      %v994 = vpop.f32.mrb[0].mxu0
      %v995 = vadd.f32 %v851, %v994
      %v996 = vpop.f32.mrb[0].mxu0
      %997 = vdwg.mxu0
      %998 = vmax.xlane.f32.xlu0 %v936
      %v999 = vpop.xlane.xlu0 %998
      %1000 = vmax.xlane.f32.xlu0 %v939
      %v1001 = vpop.xlane.xlu0 %1000
      %1002 = vmax.xlane.f32.xlu0 %v944
      %v1003 = vpop.xlane.xlu0 %1002
      %1004 = vmax.xlane.f32.xlu0 %v947
      %v1005 = vpop.xlane.xlu0 %1004
      %1006 = vmax.xlane.f32.xlu0 %v952
      %v1007 = vpop.xlane.xlu0 %1006
      %1008 = vmax.xlane.f32.xlu0 %v955
      %v1009 = vpop.xlane.xlu0 %1008
      %1010 = vmax.xlane.f32.xlu0 %v960
      %v1011 = vpop.xlane.xlu0 %1010
      %1012 = vmax.xlane.f32.xlu0 %v963
      %v1013 = vpop.xlane.xlu0 %1012
      %1014 = vmax.xlane.f32.xlu0 %v968
      %v1015 = vpop.xlane.xlu0 %1014
      %1016 = vmax.xlane.f32.xlu0 %v971
      %v1017 = vpop.xlane.xlu0 %1016
      %1018 = vmax.xlane.f32.xlu0 %v976
      %v1019 = vpop.xlane.xlu0 %1018
      %1020 = vmax.xlane.f32.xlu0 %v979
      %v1021 = vpop.xlane.xlu0 %1020
      %1022 = vmax.xlane.f32.xlu0 %v984
      %v1023 = vpop.xlane.xlu0 %1022
      %1024 = vmax.xlane.f32.xlu0 %v987
      %v1025 = vpop.xlane.xlu0 %1024
      %1026 = vmax.xlane.f32.xlu0 %v992
      %v1027 = vpop.xlane.xlu0 %1026
      %1028 = vmax.xlane.f32.xlu0 %v995
      %v1029 = vpop.xlane.xlu0 %1028
      %v1030 = vsub.f32 %v936, %v999
      %v1031 = vsub.f32 %v939, %v1001
      %v1032 = vsub.f32 %v944, %v1003
      %v1033 = vsub.f32 %v947, %v1005
      %v1034 = vsub.f32 %v952, %v1007
      %v1035 = vsub.f32 %v955, %v1009
      %v1036 = vsub.f32 %v960, %v1011
      %v1037 = vsub.f32 %v963, %v1013
      %v1038 = vsub.f32 %v968, %v1015
      %v1039 = vsub.f32 %v971, %v1017
      %v1040 = vsub.f32 %v976, %v1019
      %v1041 = vsub.f32 %v979, %v1021
      %v1042 = vsub.f32 %v984, %v1023
      %v1043 = vsub.f32 %v987, %v1025
      %v1044 = vsub.f32 %v992, %v1027
      %v1045 = vsub.f32 %v995, %v1029
      %v1046 = vmul.f32 %v1030, 1.442695
      %v1047 = vpow.pop %v1046
      %v1048 = vmul.f32 %v1031, 1.442695
      %v1049 = vpow.pop %v1048
      %v1050 = vmul.f32 %v1032, 1.442695
      %v1051 = vpow.pop %v1050
      %v1052 = vmul.f32 %v1033, 1.442695
      %v1053 = vpow.pop %v1052
      %v1054 = vmul.f32 %v1034, 1.442695
      %v1055 = vpow.pop %v1054
      %v1056 = vmul.f32 %v1035, 1.442695
      %v1057 = vpow.pop %v1056
      %v1058 = vmul.f32 %v1036, 1.442695
      %v1059 = vpow.pop %v1058
      %v1060 = vmul.f32 %v1037, 1.442695
      %v1061 = vpow.pop %v1060
      %v1062 = vmul.f32 %v1038, 1.442695
      %v1063 = vpow.pop %v1062
      %v1064 = vmul.f32 %v1039, 1.442695
      %v1065 = vpow.pop %v1064
      %v1066 = vmul.f32 %v1040, 1.442695
      %v1067 = vpow.pop %v1066
      %v1068 = vmul.f32 %v1041, 1.442695
      %v1069 = vpow.pop %v1068
      %v1070 = vmul.f32 %v1042, 1.442695
      %v1071 = vpow.pop %v1070
      %v1072 = vmul.f32 %v1043, 1.442695
      %v1073 = vpow.pop %v1072
      %v1074 = vmul.f32 %v1044, 1.442695
      %v1075 = vpow.pop %v1074
      %v1076 = vmul.f32 %v1045, 1.442695
      %v1077 = vpow.pop %v1076
      %1078 = vadd.xlane.f32.xlu0 %v1047
      %v1079 = vpop.xlane.xlu0 %1078
      %1080 = vadd.xlane.f32.xlu0 %v1049
      %v1081 = vpop.xlane.xlu0 %1080
      %1082 = vadd.xlane.f32.xlu0 %v1051
      %v1083 = vpop.xlane.xlu0 %1082
      %1084 = vadd.xlane.f32.xlu0 %v1053
      %v1085 = vpop.xlane.xlu0 %1084
      %1086 = vadd.xlane.f32.xlu0 %v1055
      %v1087 = vpop.xlane.xlu0 %1086
      %1088 = vadd.xlane.f32.xlu0 %v1057
      %v1089 = vpop.xlane.xlu0 %1088
      %1090 = vadd.xlane.f32.xlu0 %v1059
      %v1091 = vpop.xlane.xlu0 %1090
      %1092 = vadd.xlane.f32.xlu0 %v1061
      %v1093 = vpop.xlane.xlu0 %1092
      %1094 = vadd.xlane.f32.xlu0 %v1063
      %v1095 = vpop.xlane.xlu0 %1094
      %1096 = vadd.xlane.f32.xlu0 %v1065
      %v1097 = vpop.xlane.xlu0 %1096
      %1098 = vadd.xlane.f32.xlu0 %v1067
      %v1099 = vpop.xlane.xlu0 %1098
      %1100 = vadd.xlane.f32.xlu0 %v1069
      %v1101 = vpop.xlane.xlu0 %1100
      %1102 = vadd.xlane.f32.xlu0 %v1071
      %v1103 = vpop.xlane.xlu0 %1102
      %1104 = vadd.xlane.f32.xlu0 %v1073
      %v1105 = vpop.xlane.xlu0 %1104
      %1106 = vadd.xlane.f32.xlu0 %v1075
      %v1107 = vpop.xlane.xlu0 %1106
      %1108 = vadd.xlane.f32.xlu0 %v1077
      %v1109 = vpop.xlane.xlu0 %1108
      %v1110 = vlog2.pop %v1079
      %v1111 = vmul.f32 %v1110, 0.6931472
      %v1112 = vlog2.pop %v1081
      %v1113 = vmul.f32 %v1112, 0.6931472
      %v1114 = vlog2.pop %v1083
      %v1115 = vmul.f32 %v1114, 0.6931472
      %v1116 = vlog2.pop %v1085
      %v1117 = vmul.f32 %v1116, 0.6931472
      %v1118 = vlog2.pop %v1087
      %v1119 = vmul.f32 %v1118, 0.6931472
      %v1120 = vlog2.pop %v1089
      %v1121 = vmul.f32 %v1120, 0.6931472
      %v1122 = vlog2.pop %v1091
      %v1123 = vmul.f32 %v1122, 0.6931472
      %v1124 = vlog2.pop %v1093
      %v1125 = vmul.f32 %v1124, 0.6931472
      %v1126 = vlog2.pop %v1095
      %v1127 = vmul.f32 %v1126, 0.6931472
      %v1128 = vlog2.pop %v1097
      %v1129 = vmul.f32 %v1128, 0.6931472
      %v1130 = vlog2.pop %v1099
      %v1131 = vmul.f32 %v1130, 0.6931472
      %v1132 = vlog2.pop %v1101
      %v1133 = vmul.f32 %v1132, 0.6931472
      %v1134 = vlog2.pop %v1103
      %v1135 = vmul.f32 %v1134, 0.6931472
      %v1136 = vlog2.pop %v1105
      %v1137 = vmul.f32 %v1136, 0.6931472
      %v1138 = vlog2.pop %v1107
      %v1139 = vmul.f32 %v1138, 0.6931472
      %v1140 = vlog2.pop %v1109
      %v1141 = vmul.f32 %v1140, 0.6931472
      %v1142 = vsub.f32 %v1030, %v1111
      %v1143 = vsub.f32 %v1031, %v1113
      %v1144 = vsub.f32 %v1032, %v1115
      %v1145 = vsub.f32 %v1033, %v1117
      %v1146 = vsub.f32 %v1034, %v1119
      %v1147 = vsub.f32 %v1035, %v1121
      %v1148 = vsub.f32 %v1036, %v1123
      %v1149 = vsub.f32 %v1037, %v1125
      %v1150 = vsub.f32 %v1038, %v1127
      %v1151 = vsub.f32 %v1039, %v1129
      %v1152 = vsub.f32 %v1040, %v1131
      %v1153 = vsub.f32 %v1041, %v1133
      %v1154 = vsub.f32 %v1042, %v1135
      %v1155 = vsub.f32 %v1043, %v1137
      %v1156 = vsub.f32 %v1044, %v1139
      %v1157 = vsub.f32 %v1045, %v1141
      %1158 = vst [vmem:[%s283] sm:$0xff] %v1142
      %1159 = vst [vmem:[%s283 + $0x8] sm:$0xff] %v1143
      %1160 = vst [vmem:[%s283 + $0x10] sm:$0xff] %v1144
      %1161 = vst [vmem:[%s283 + $0x18] sm:$0xff] %v1145
      %1162 = vst [vmem:[%s283 + $0x20] sm:$0xff] %v1146
      %1163 = vst [vmem:[%s283 + $0x28] sm:$0xff] %v1147
      %1164 = vst [vmem:[%s283 + $0x30] sm:$0xff] %v1148
      %1165 = vst [vmem:[%s283 + $0x38] sm:$0xff] %v1149
      %1166 = vst [vmem:[%s283 + $0x40] sm:$0xff] %v1150
      %1167 = vst [vmem:[%s283 + $0x48] sm:$0xff] %v1151
      %1168 = vst [vmem:[%s283 + $0x50] sm:$0xff] %v1152
      %1169 = vst [vmem:[%s283 + $0x58] sm:$0xff] %v1153
      %1170 = vst [vmem:[%s283 + $0x60] sm:$0xff] %v1154
      %1171 = vst [vmem:[%s283 + $0x68] sm:$0xff] %v1155
      %1172 = vst [vmem:[%s283 + $0x70] sm:$0xff] %v1156
      %1173 = vst [vmem:[%s283 + $0x78] sm:$0xff] %v1157
      %s1174 = smul.u32 16, %s18
      %p1175 = scmp.lt.s32.totalorder %s1174, 47
      %s1176 = scalar_select %p1175, %s1174, 47
      %s1177 = smul.addr %s1176, 8
      %s1178 = scalar_lea.vmem %s7, %s1177
      // Predicated region
      $region49: #{mynn_forward.1} parent=47 // pred_check
        %p1179 = pneg %p188
      $region50: #{mynn_forward.1} parent=47 // pred_check_branch
        %1181 = sbr.rel (%p1179) target = $region52
      $region51: #{mynn_forward.1} parent=47 // pred_region
        %s1182 = smul.u32 16, %s18
      $region52: #{mynn_forward.1} parent=47 // pred_fallthru
        _
    $region48: #{mynn_forward.1} parent=5 // pred_fallthru
      _
    %p1183 = scmp.le.s32.totalorder 2, %s13
    // Predicated region
    $region53: #{mynn_forward.1} parent=5 // pred_check
      %p1184 = pneg %p1183
    $region54: #{mynn_forward.1} parent=5 // pred_check_branch
      %1186 = sbr.rel (%p1184) target = $region56
    $region55: #{mynn_forward.1} parent=5 // pred_region
      %s1187 = ssub.s32 %s13, 2
      // Predicated region
      $region57: #{mynn_forward.1} parent=55 // pred_check
        %p1188 = pneg %p194
      $region58: #{mynn_forward.1} parent=55 // pred_check_branch
        %1190 = sbr.rel (%p1188) target = $region60
      $region59: #{mynn_forward.1} parent=55 // pred_region
        %s1191 = smul.u32 16, %s19
        %p1192 = scmp.lt.s32.totalorder %s1191, 47
        %s1193 = scalar_select %p1192, %s1191, 47
        %s1194 = smul.addr %s1193, 8
        %s1195 = scalar_lea.vmem %s7, %s1194
      $region60: #{mynn_forward.1} parent=55 // pred_fallthru
        _
    $region56: #{mynn_forward.1} parent=5 // pred_fallthru
      _
  $region6: #{mynn_forward.1} parent=0 // loop_footer
    %s17 = sadd.s32 1, %s13
  $region7: #{mynn_forward.1} parent=0 // loop_footer_branch
    %12 = sbr.rel target = $region3
  $region8: #{mynn_forward.1} parent=0 // loop_exit
    _

</llo_original>
